<compile_context>
chip_gen: v5e
topology: v5e:2x2
jax: 0.10.0
libtpu: 0.0.40
codegen_flags: <defaults>
</compile_context>

<pallas_src>
import jax
import jax.numpy as jnp
from jax.experimental import pallas as pl
from jax.experimental.pallas import tpu as pltpu


# Fixed calibrated per-tensor int8 scales (QuantStub in a converted/eval model uses
# frozen observer scales). Order: [base_enc, identity, base_latent, delta, mag, output]
_CAL_SCALES = (6.0 / 127.0, 6.0 / 127.0, 6.0 / 127.0, 6.0 / 127.0,
               1.0 / 127.0, 8.0 / 127.0)

_INV_BE = 1.0 / _CAL_SCALES[0]   # base_enc quantization reciprocal (compile-time const)
_INV_OUT = 1.0 / _CAL_SCALES[5]  # output quantization reciprocal
_S_OUT = _CAL_SCALES[5]          # output dequant scale

_GROUP = 32                      # spatial positions packed per kernel row


# -----------------------------------------------------------------------------
# Kernel
# -----------------------------------------------------------------------------
def _client_kernel(be_ref,    # VMEM (tile, 32*C)      lane-packed base_enc block (f32)
                   mod_ref,   # VMEM (B, 32*C)         per-batch scaled modulation (f32)
                   w_ref,     # VMEM (32*C, 32*OUT_C)  block-diag projection (bf16)
                   b_ref,     # VMEM (1, 32*OUT_C)     packed bias (f32)
                   out_ref):  # VMEM (tile, 32*OUT_C)  lane-packed output block (f32)
    b = pl.program_id(0)

    # QuantStub(base_enc): round/clip to the int8 grid; the dequant scale is folded
    # into mod_ref in the wrapper (one multiply instead of two on the hot path).
    q_be = jnp.clip(jnp.round(be_ref[...] * _INV_BE), -128.0, 127.0)      # (tile, 32C)
    feat = q_be * mod_ref[pl.ds(b, 1), :]                                 # (tile, 32C)

    # Single lane-dense MXU call: (tile, 32C) @ (32C, 32*OUT_C), f32 accumulation.
    img = jnp.dot(feat.astype(jnp.bfloat16), w_ref[...],
                  preferred_element_type=jnp.float32) + b_ref[...]        # (tile, 32*OUT_C)

    # DeQuantStub: output of the quantized `main` is int8 fake-quantized -> float32.
    q = jnp.clip(jnp.round(img * _INV_OUT), -128.0, 127.0)
    out_ref[...] = (q * _S_OUT).astype(out_ref.dtype)


def _pick_tile(n, cap=1024):
    """Largest multiple-of-8 divisor of n that is <= cap (keeps blocks (8,128)-aligned
    and the pipeline fed). Falls back to the full extent only if no such divisor."""
    best = 0
    d = 8
    while d <= min(n, cap):
        if n % d == 0:
            best = d
        d += 8
    # TODO(synk): for pathological spatial sizes use a cdiv grid + masked tail tile.
    return best if best else n


# -----------------------------------------------------------------------------
# Wrapper
# -----------------------------------------------------------------------------
@jax.jit
def wrapper_forward(base_enc, identity, base_latent, delta, mag,
                    w_mod, b_mod, w_out, b_out):
    B, H, W, C = base_enc.shape
    OUT_C = w_out.shape[1]
    HW = H * W

    G = _GROUP
    IN_LANES = G * C
    OUT_LANES = G * OUT_C
    assert IN_LANES % 128 == 0, "32*C must be a multiple of 128 for lane-dense input"
    assert HW % G == 0, "H*W must be a multiple of the 32-position pack group"
    n_rows = HW // G                       # packed rows per image

    # lane-pack base_enc: (B,H,W,C) -> (B, HW/32, 32*C). Pure row-major view (no copy).
    be_packed = base_enc.reshape(B, n_rows, IN_LANES)

    # ---- per-batch modulation chain, hoisted out of the kernel (per-batch work) ----
    s = jnp.asarray(_CAL_SCALES, jnp.float32)

    def fq(x, i):
        return jnp.clip(jnp.round(x * (1.0 / s[i])), -128.0, 127.0) * s[i]

    # TODO(synk): v0_1.get_prod_client() weights/architecture are not available in this
    # repo snapshot; this is a minimal latent-modulated decoder stand-in for the client.
    idn = fq(identity, 1)
    lat = fq(base_latent, 2)
    dlt = fq(delta, 3)
    mg = fq(mag, 4)
    z = lat + mg * dlt + idn                                             # (B, D)
    mod = jnp.tanh(jnp.dot(z.astype(jnp.bfloat16), w_mod.astype(jnp.bfloat16),
                           preferred_element_type=jnp.float32) + b_mod)  # (B, C)
    # fold the base_enc dequant scale into the modulation and replicate across the
    # G packed positions (position-major, channel-minor -> matches be_packed lanes)
    mod_scaled = jnp.tile((1.0 + mod) * s[0], (1, G))                    # (B, 32*C)

    # block-diagonal projection: input lanes [p*C:(p+1)*C] -> output lanes
    # [p*OUT_C:(p+1)*OUT_C].  Exactly OUT_C output channels per position (no padding).
    w_block = jnp.kron(jnp.eye(G, dtype=jnp.float32), w_out).astype(jnp.bfloat16)
    b_block = jnp.tile(b_out.reshape(1, OUT_C), (1, G))                  # (1, 32*OUT_C)

    tile = _pick_tile(n_rows)
    grid = (B, n_rows // tile)

    out_packed = pl.pallas_call(
        _client_kernel,
        out_shape=jax.ShapeDtypeStruct((B, n_rows, OUT_LANES), jnp.float32),
        grid=grid,
        in_specs=[
            pl.BlockSpec((None, tile, IN_LANES), lambda b, t: (b, t, 0)),   # base_enc
            pl.BlockSpec((B, IN_LANES), lambda b, t: (0, 0)),               # mod (resident)
            pl.BlockSpec((IN_LANES, OUT_LANES), lambda b, t: (0, 0)),       # w_block
            pl.BlockSpec((1, OUT_LANES), lambda b, t: (0, 0)),              # b_block
        ],
        out_specs=pl.BlockSpec((None, tile, OUT_LANES), lambda b, t: (b, t, 0)),
        compiler_params=pltpu.CompilerParams(
            dimension_semantics=("parallel", "parallel")),
    )(be_packed, mod_scaled, w_block, b_block)

    # pure view reshape back to NHWC (no slice / copy pass): (B, HW/32, 32*OUT_C)
    # -> (B, HW/32, 32, OUT_C) -> (B, H, W, OUT_C)
    return out_packed.reshape(B, n_rows, G, OUT_C).reshape(B, H, W, OUT_C)


# -----------------------------------------------------------------------------
# Main
# -----------------------------------------------------------------------------
if __name__ == "__main__":
    B, H, W, C = 2, 16, 16, 32     # base_enc feature map (NHWC)
    D = 32                         # identity / latent / delta dim
    OUT_C = 3                      # output image channels

    key = jax.random.PRNGKey(0)
    k = jax.random.split(key, 9)

    base_enc = jax.random.normal(k[0], (B, H, W, C), jnp.float32)
    identity = jax.random.normal(k[1], (B, D), jnp.float32)
    base_latent = jax.random.normal(k[2], (B, D), jnp.float32)
    delta = jax.random.normal(k[3], (B, D), jnp.float32)
    mag = jax.random.uniform(k[4], (B, 1), jnp.float32)

    # deterministic synthetic parameters for the stand-in client model
    w_mod = jax.random.normal(k[5], (D, C), jnp.float32) * (1.0 / jnp.sqrt(D))
    b_mod = jax.random.normal(k[6], (1, C), jnp.float32) * 0.1
    w_out = jax.random.normal(k[7], (C, OUT_C), jnp.float32) * (1.0 / jnp.sqrt(C))
    b_out = jax.random.normal(k[8], (1, OUT_C), jnp.float32) * 0.1

    img = wrapper_forward(base_enc, identity, base_latent, delta, mag,
                          w_mod, b_mod, w_out, b_out)
    jax.block_until_ready(img)

    # pure-JAX reference of the same stand-in math (loose tolerance: one quant-bin flip)
    def reference(be, idn, lat, dlt, mg):
        s = jnp.asarray(_CAL_SCALES, jnp.float32)

        def fq(x, i):
            return jnp.clip(jnp.round(x * (1.0 / s[i])), -128.0, 127.0) * s[i]

        be, idn, lat, dlt, mg = fq(be, 0), fq(idn, 1), fq(lat, 2), fq(dlt, 3), fq(mg, 4)
        z = lat + mg * dlt + idn
        mod = jnp.tanh(jnp.dot(z.astype(jnp.bfloat16), w_mod.astype(jnp.bfloat16),
                               preferred_element_type=jnp.float32) + b_mod)
        feat = be * (1.0 + mod[:, None, None, :])
        out = jnp.einsum("bhwc,co->bhwo", feat.astype(jnp.bfloat16),
                         w_out.astype(jnp.bfloat16),
                         preferred_element_type=jnp.float32) + b_out[0]
        return fq(out, 5)

    ref = reference(base_enc, identity, base_latent, delta, mag)
    assert img.shape == (B, H, W, OUT_C) and img.dtype == jnp.float32
    assert float(jnp.max(jnp.abs(img - ref))) < 0.1
    print("KERNEL_OK")
</pallas_src>

<mosaic_0001>
module attributes {stable_mosaic.version = 11 : i64} {
  func.func @_client_kernel(%arg0: i32, %arg1: i32, %arg2: memref<1x8x1024xf32, #tpu.memory_space<vmem>>, %arg3: memref<2x1024xf32, #tpu.memory_space<vmem>>, %arg4: memref<1024x96xbf16, #tpu.memory_space<vmem>>, %arg5: memref<1x96xf32, #tpu.memory_space<vmem>>, %arg6: memref<1x8x96xf32, #tpu.memory_space<vmem>>) attributes {dimension_semantics = [#tpu.dimension_semantics<parallel>, #tpu.dimension_semantics<parallel>], iteration_bounds = array<i64: 2, 1>, scalar_prefetch = 0 : i64, scratch_operands = 0 : i64, tpu.core_type = #tpu.core_type<tc>, window_params = [{transform_indices = @transform_0, window_bounds = array<i64: 1, 8, 1024>}, {pipeline_mode = #tpu.pipeline_mode<synchronous>, transform_indices = @transform_1, window_bounds = array<i64: 2, 1024>}, {pipeline_mode = #tpu.pipeline_mode<synchronous>, transform_indices = @transform_2, window_bounds = array<i64: 1024, 96>}, {pipeline_mode = #tpu.pipeline_mode<synchronous>, transform_indices = @transform_3, window_bounds = array<i64: 1, 96>}, {transform_indices = @transform_4, window_bounds = array<i64: 1, 8, 96>}]} {
    %c0 = arith.constant 0 : index
    %c0_0 = arith.constant 0 : index
    %c0_1 = arith.constant 0 : index
    %0 = vector.load %arg2[%c0, %c0_0, %c0_1] : memref<1x8x1024xf32, #tpu.memory_space<vmem>>, vector<1x8x1024xf32>
    %1 = vector.shape_cast %0 : vector<1x8x1024xf32> to vector<8x1024xf32>
    %cst = arith.constant 21.166666 : f32
    %2 = vector.broadcast %cst : f32 to vector<8x1024xf32>
    %3 = arith.mulf %1, %2 : vector<8x1024xf32>
    %4 = math.roundeven %3 : vector<8x1024xf32>
    %cst_2 = arith.constant -1.280000e+02 : f32
    %cst_3 = arith.constant 1.270000e+02 : f32
    %5 = vector.broadcast %cst_2 : f32 to vector<8x1024xf32>
    %6 = arith.maximumf %5, %4 : vector<8x1024xf32>
    %7 = vector.broadcast %cst_3 : f32 to vector<8x1024xf32>
    %8 = arith.minimumf %7, %6 : vector<8x1024xf32>
    %9 = arith.index_cast %arg0 : i32 to index
    %c0_4 = arith.constant 0 : index
    %10 = vector.load %arg3[%9, %c0_4] : memref<2x1024xf32, #tpu.memory_space<vmem>>, vector<1x1024xf32>
    %11 = vector.broadcast %10 : vector<1x1024xf32> to vector<8x1024xf32>
    %12 = arith.mulf %8, %11 : vector<8x1024xf32>
    %13 = arith.truncf %12 : vector<8x1024xf32> to vector<8x1024xbf16>
    %c0_5 = arith.constant 0 : index
    %c0_6 = arith.constant 0 : index
    %14 = vector.load %arg4[%c0_5, %c0_6] : memref<1024x96xbf16, #tpu.memory_space<vmem>>, vector<1024x96xbf16>
    %cst_7 = arith.constant dense<0.000000e+00> : vector<8x96xf32>
    %15 = tpu.matmul %13, %14, %cst_7 {dimension_numbers = #tpu.dot_dimension_numbers<[1], [0], [0], [1], [0, 0, 1, 1], [], []>} : vector<8x1024xbf16>, vector<1024x96xbf16>, vector<8x96xf32> -> vector<8x96xf32>
    %c0_8 = arith.constant 0 : index
    %c0_9 = arith.constant 0 : index
    %16 = vector.load %arg5[%c0_8, %c0_9] : memref<1x96xf32, #tpu.memory_space<vmem>>, vector<1x96xf32>
    %17 = vector.broadcast %16 : vector<1x96xf32> to vector<8x96xf32>
    %18 = arith.addf %15, %17 : vector<8x96xf32>
    %cst_10 = arith.constant 1.587500e+01 : f32
    %19 = vector.broadcast %cst_10 : f32 to vector<8x96xf32>
    %20 = arith.mulf %18, %19 : vector<8x96xf32>
    %21 = math.roundeven %20 : vector<8x96xf32>
    %cst_11 = arith.constant -1.280000e+02 : f32
    %cst_12 = arith.constant 1.270000e+02 : f32
    %22 = vector.broadcast %cst_11 : f32 to vector<8x96xf32>
    %23 = arith.maximumf %22, %21 : vector<8x96xf32>
    %24 = vector.broadcast %cst_12 : f32 to vector<8x96xf32>
    %25 = arith.minimumf %24, %23 : vector<8x96xf32>
    %cst_13 = arith.constant 0.0629921257 : f32
    %26 = vector.broadcast %cst_13 : f32 to vector<8x96xf32>
    %27 = arith.mulf %25, %26 : vector<8x96xf32>
    %c0_14 = arith.constant 0 : index
    %c0_15 = arith.constant 0 : index
    %c0_16 = arith.constant 0 : index
    %28 = vector.load %arg6[%c0_14, %c0_15, %c0_16] : memref<1x8x96xf32, #tpu.memory_space<vmem>>, vector<1x8x96xf32>
    %29 = vector.shape_cast %28 : vector<1x8x96xf32> to vector<8x96xf32>
    %30 = vector.shape_cast %27 : vector<8x96xf32> to vector<1x8x96xf32>
    tpu.vector_store %arg6[%c0_14, %c0_15, %c0_16], %30 {strides = array<i32>} : memref<1x8x96xf32, #tpu.memory_space<vmem>>, vector<1x8x96xf32>,
    return
  }
  func.func @transform_0(%arg0: i32, %arg1: i32) -> (i32, i32, i32) {
    %c0_i32 = arith.constant 0 : i32
    %c0_i32_0 = arith.constant 0 : i32
    return %arg0, %arg1, %c0_i32 : i32, i32, i32
  }
  func.func @transform_1(%arg0: i32, %arg1: i32) -> (i32, i32) {
    %c0_i32 = arith.constant 0 : i32
    %c0_i32_0 = arith.constant 0 : i32
    %c0_i32_1 = arith.constant 0 : i32
    return %c0_i32, %c0_i32_0 : i32, i32
  }
  func.func @transform_2(%arg0: i32, %arg1: i32) -> (i32, i32) {
    %c0_i32 = arith.constant 0 : i32
    %c0_i32_0 = arith.constant 0 : i32
    %c0_i32_1 = arith.constant 0 : i32
    return %c0_i32, %c0_i32_0 : i32, i32
  }
  func.func @transform_3(%arg0: i32, %arg1: i32) -> (i32, i32) {
    %c0_i32 = arith.constant 0 : i32
    %c0_i32_0 = arith.constant 0 : i32
    %c0_i32_1 = arith.constant 0 : i32
    return %c0_i32, %c0_i32_0 : i32, i32
  }
  func.func @transform_4(%arg0: i32, %arg1: i32) -> (i32, i32, i32) {
    %c0_i32 = arith.constant 0 : i32
    %c0_i32_0 = arith.constant 0 : i32
    return %arg0, %arg1, %c0_i32 : i32, i32, i32
  }
}

</mosaic_0001>

<llo_original>
// kernel: tile.14
$region0: #{tile.14}
  %s0 = inlined_call_operand.vmem [shape: f32[2,32,32], index: 0, kind: input, shape index: {}]
  %s1 = inlined_call_operand.vmem [shape: f32[2,1024], index: 1, kind: output, shape index: {}]
  $region1: #{tile.14} parent=0
    #allocation0 [shape = 'u8[32768]{0}', space=vmem, size = 0x8000, scoped, tag = 'scoped mem for output reshape']
    %v2 = vld [vmem:[%s0] ss:$4 sm:$0xff]
    %vm3 = vcmask 261120
    %4 = vst.msk [vmem:[#allocation0] ss:$8 sm:$0xf] %vm3, %v2
    %5 = vst.msk [vmem:[#allocation0] ss:$8 sm:$0xf0] %vm3, %v2
    %s6 = scalar_lea.vmem %s0, 32
    %v7 = vld [vmem:[%s6] ss:$4 sm:$0xff]
    %vm8 = vcmask 261120
    %s9 = scalar_lea.vmem [#allocation0], 1
    %10 = vst.msk [vmem:[%s9] ss:$8 sm:$0xf] %vm8, %v7
    %s11 = scalar_lea.vmem [#allocation0], 1
    %12 = vst.msk [vmem:[%s11] ss:$8 sm:$0xf0] %vm8, %v7
    %s13 = scalar_lea.vmem %s0, 3
    %v14 = vld [vmem:[%s13] sm:$0x1]
    %s15 = scalar_lea.vmem %s0, 63
    %s16 = smov 6
    %v17 = vld [vmem:[%s15] ss:$-28 sm:%s16]
    %vm18 = vcmask 1042433
    %v19 = vsel %vm18, %v17, %v14
    %s20 = scalar_lea.vmem %s0, 123
    %s21 = smov 24
    %v22 = vld [vmem:[%s20] ss:$-28 sm:%s21]
    %vm23 = vcmask 1044483
    %v24 = vsel %vm23, %v22, %v19
    %s25 = scalar_lea.vmem %s0, 183
    %s26 = smov 96
    %v27 = vld [vmem:[%s25] ss:$-28 sm:%s26]
    %vm28 = vcmask 1046533
    %v29 = vsel %vm28, %v27, %v24
    %s30 = scalar_lea.vmem %s0, 40
    %v31 = vld [vmem:[%s30] sm:$0x80]
    %vm32 = vcmask 1047559
    %v33 = vsel %vm32, %v31, %v29
    %34 = vrot.lane.b32.xlu0 %v33, 96
    %v35 = vpop.permute.xlu0 %34
    %vm36 = vcmask 1048320
    %37 = vst.msk [vmem:[#allocation0] sm:$0x3] %vm36, %v35
    %s38 = scalar_lea.vmem [#allocation0], 6
    %39 = vst.msk [vmem:[%s38] sm:$0xc] %vm36, %v35
    %s40 = scalar_lea.vmem [#allocation0], 12
    %41 = vst.msk [vmem:[%s40] sm:$0x30] %vm36, %v35
    %s42 = scalar_lea.vmem [#allocation0], 18
    %43 = vst.msk [vmem:[%s42] sm:$0xc0] %vm36, %v35
    %s44 = scalar_lea.vmem %s0, 19
    %v45 = vld [vmem:[%s44] sm:$0x1]
    %s46 = scalar_lea.vmem %s0, 79
    %s47 = smov 6
    %v48 = vld [vmem:[%s46] ss:$-28 sm:%s47]
    %vm49 = vcmask 1042433
    %v50 = vsel %vm49, %v48, %v45
    %s51 = scalar_lea.vmem %s0, 139
    %s52 = smov 24
    %v53 = vld [vmem:[%s51] ss:$-28 sm:%s52]
    %vm54 = vcmask 1044483
    %v55 = vsel %vm54, %v53, %v50
    %s56 = scalar_lea.vmem %s0, 199
    %s57 = smov 96
    %v58 = vld [vmem:[%s56] ss:$-28 sm:%s57]
    %vm59 = vcmask 1046533
    %v60 = vsel %vm59, %v58, %v55
    %s61 = scalar_lea.vmem %s0, 56
    %v62 = vld [vmem:[%s61] sm:$0x80]
    %vm63 = vcmask 1047559
    %v64 = vsel %vm63, %v62, %v60
    %65 = vrot.lane.b32.xlu0 %v64, 96
    %v66 = vpop.permute.xlu0 %65
    %vm67 = vcmask 1048320
    %s68 = scalar_lea.vmem [#allocation0], 32
    %69 = vst.msk [vmem:[%s68] sm:$0x3] %vm67, %v66
    %s70 = scalar_lea.vmem [#allocation0], 38
    %71 = vst.msk [vmem:[%s70] sm:$0xc] %vm67, %v66
    %s72 = scalar_lea.vmem [#allocation0], 44
    %73 = vst.msk [vmem:[%s72] sm:$0x30] %vm67, %v66
    %s74 = scalar_lea.vmem [#allocation0], 50
    %75 = vst.msk [vmem:[%s74] sm:$0xc0] %vm67, %v66
    %s76 = scalar_lea.vmem %s0, 2
    %v77 = vld [vmem:[%s76] sm:$0x1]
    %s78 = scalar_lea.vmem %s0, 62
    %s79 = smov 6
    %v80 = vld [vmem:[%s78] ss:$-28 sm:%s79]
    %vm81 = vcmask 1042433
    %v82 = vsel %vm81, %v80, %v77
    %s83 = scalar_lea.vmem %s0, 122
    %s84 = smov 24
    %v85 = vld [vmem:[%s83] ss:$-28 sm:%s84]
    %vm86 = vcmask 1044483
    %v87 = vsel %vm86, %v85, %v82
    %s88 = scalar_lea.vmem %s0, 182
    %s89 = smov 96
    %v90 = vld [vmem:[%s88] ss:$-28 sm:%s89]
    %vm91 = vcmask 1046533
    %v92 = vsel %vm91, %v90, %v87
    %s93 = scalar_lea.vmem %s0, 39
    %v94 = vld [vmem:[%s93] sm:$0x80]
    %vm95 = vcmask 1047559
    %v96 = vsel %vm95, %v94, %v92
    %97 = vrot.lane.b32.xlu0 %v96, 64
    %v98 = vpop.permute.xlu0 %97
    %vm99 = vcmask 785920
    %100 = vst.msk [vmem:[#allocation0] sm:$0x3] %vm99, %v98
    %s101 = scalar_lea.vmem [#allocation0], 6
    %102 = vst.msk [vmem:[%s101] sm:$0xc] %vm99, %v98
    %s103 = scalar_lea.vmem [#allocation0], 12
    %104 = vst.msk [vmem:[%s103] sm:$0x30] %vm99, %v98
    %s105 = scalar_lea.vmem [#allocation0], 18
    %106 = vst.msk [vmem:[%s105] sm:$0xc0] %vm99, %v98
    %s107 = scalar_lea.vmem %s0, 18
    %v108 = vld [vmem:[%s107] sm:$0x1]
    %s109 = scalar_lea.vmem %s0, 78
    %s110 = smov 6
    %v111 = vld [vmem:[%s109] ss:$-28 sm:%s110]
    %vm112 = vcmask 1042433
    %v113 = vsel %vm112, %v111, %v108
    %s114 = scalar_lea.vmem %s0, 138
    %s115 = smov 24
    %v116 = vld [vmem:[%s114] ss:$-28 sm:%s115]
    %vm117 = vcmask 1044483
    %v118 = vsel %vm117, %v116, %v113
    %s119 = scalar_lea.vmem %s0, 198
    %s120 = smov 96
    %v121 = vld [vmem:[%s119] ss:$-28 sm:%s120]
    %vm122 = vcmask 1046533
    %v123 = vsel %vm122, %v121, %v118
    %s124 = scalar_lea.vmem %s0, 55
    %v125 = vld [vmem:[%s124] sm:$0x80]
    %vm126 = vcmask 1047559
    %v127 = vsel %vm126, %v125, %v123
    %128 = vrot.lane.b32.xlu0 %v127, 64
    %v129 = vpop.permute.xlu0 %128
    %vm130 = vcmask 785920
    %s131 = scalar_lea.vmem [#allocation0], 32
    %132 = vst.msk [vmem:[%s131] sm:$0x3] %vm130, %v129
    %s133 = scalar_lea.vmem [#allocation0], 38
    %134 = vst.msk [vmem:[%s133] sm:$0xc] %vm130, %v129
    %s135 = scalar_lea.vmem [#allocation0], 44
    %136 = vst.msk [vmem:[%s135] sm:$0x30] %vm130, %v129
    %s137 = scalar_lea.vmem [#allocation0], 50
    %138 = vst.msk [vmem:[%s137] sm:$0xc0] %vm130, %v129
    %s139 = scalar_lea.vmem %s0, 1
    %v140 = vld [vmem:[%s139] sm:$0x1]
    %s141 = scalar_lea.vmem %s0, 61
    %s142 = smov 6
    %v143 = vld [vmem:[%s141] ss:$-28 sm:%s142]
    %vm144 = vcmask 1042433
    %v145 = vsel %vm144, %v143, %v140
    %s146 = scalar_lea.vmem %s0, 121
    %s147 = smov 24
    %v148 = vld [vmem:[%s146] ss:$-28 sm:%s147]
    %vm149 = vcmask 1044483
    %v150 = vsel %vm149, %v148, %v145
    %s151 = scalar_lea.vmem %s0, 181
    %s152 = smov 96
    %v153 = vld [vmem:[%s151] ss:$-28 sm:%s152]
    %vm154 = vcmask 1046533
    %v155 = vsel %vm154, %v153, %v150
    %s156 = scalar_lea.vmem %s0, 38
    %v157 = vld [vmem:[%s156] sm:$0x80]
    %vm158 = vcmask 1047559
    %v159 = vsel %vm158, %v157, %v155
    %160 = vrot.lane.b32.xlu0 %v159, 32
    %v161 = vpop.permute.xlu0 %160
    %vm162 = vcmask 523520
    %163 = vst.msk [vmem:[#allocation0] sm:$0x3] %vm162, %v161
    %s164 = scalar_lea.vmem [#allocation0], 6
    %165 = vst.msk [vmem:[%s164] sm:$0xc] %vm162, %v161
    %s166 = scalar_lea.vmem [#allocation0], 12
    %167 = vst.msk [vmem:[%s166] sm:$0x30] %vm162, %v161
    %s168 = scalar_lea.vmem [#allocation0], 18
    %169 = vst.msk [vmem:[%s168] sm:$0xc0] %vm162, %v161
    %s170 = scalar_lea.vmem %s0, 17
    %v171 = vld [vmem:[%s170] sm:$0x1]
    %s172 = scalar_lea.vmem %s0, 77
    %s173 = smov 6
    %v174 = vld [vmem:[%s172] ss:$-28 sm:%s173]
    %vm175 = vcmask 1042433
    %v176 = vsel %vm175, %v174, %v171
    %s177 = scalar_lea.vmem %s0, 137
    %s178 = smov 24
    %v179 = vld [vmem:[%s177] ss:$-28 sm:%s178]
    %vm180 = vcmask 1044483
    %v181 = vsel %vm180, %v179, %v176
    %s182 = scalar_lea.vmem %s0, 197
    %s183 = smov 96
    %v184 = vld [vmem:[%s182] ss:$-28 sm:%s183]
    %vm185 = vcmask 1046533
    %v186 = vsel %vm185, %v184, %v181
    %s187 = scalar_lea.vmem %s0, 54
    %v188 = vld [vmem:[%s187] sm:$0x80]
    %vm189 = vcmask 1047559
    %v190 = vsel %vm189, %v188, %v186
    %191 = vrot.lane.b32.xlu0 %v190, 32
    %v192 = vpop.permute.xlu0 %191
    %vm193 = vcmask 523520
    %s194 = scalar_lea.vmem [#allocation0], 32
    %195 = vst.msk [vmem:[%s194] sm:$0x3] %vm193, %v192
    %s196 = scalar_lea.vmem [#allocation0], 38
    %197 = vst.msk [vmem:[%s196] sm:$0xc] %vm193, %v192
    %s198 = scalar_lea.vmem [#allocation0], 44
    %199 = vst.msk [vmem:[%s198] sm:$0x30] %vm193, %v192
    %s200 = scalar_lea.vmem [#allocation0], 50
    %201 = vst.msk [vmem:[%s200] sm:$0xc0] %vm193, %v192
    %s203 = ssub.s32 4, 1
    %v204 = vld [vmem:[#allocation0] sm:%s203]
    %s206 = ssub.s32 4, 1
    %207 = vst [vmem:[%s1] sm:%s206] %v204
    %s208 = scalar_lea.vmem [#allocation0], 8
    %v209 = vld [vmem:[%s208] sm:%s203]
    %s211 = ssub.s32 4, 1
    %s212 = scalar_lea.vmem %s1, 2
    %213 = vst [vmem:[%s212] sm:%s211] %v209
    %s214 = scalar_lea.vmem [#allocation0], 16
    %v215 = vld [vmem:[%s214] sm:%s203]
    %s217 = ssub.s32 4, 1
    %s218 = scalar_lea.vmem %s1, 4
    %219 = vst [vmem:[%s218] sm:%s217] %v215
    %s220 = scalar_lea.vmem [#allocation0], 24
    %v221 = vld [vmem:[%s220] sm:%s203]
    %s223 = ssub.s32 4, 1
    %s224 = scalar_lea.vmem %s1, 6
    %225 = vst [vmem:[%s224] sm:%s223] %v221
    %s226 = scalar_lea.vmem [#allocation0], 32
    %v227 = vld [vmem:[%s226] sm:%s203]
    %s229 = ssub.s32 4, 1
    %s230 = scalar_lea.vmem %s1, 8
    %231 = vst [vmem:[%s230] sm:%s229] %v227
    %s232 = scalar_lea.vmem [#allocation0], 40
    %v233 = vld [vmem:[%s232] sm:%s203]
    %s235 = ssub.s32 4, 1
    %s236 = scalar_lea.vmem %s1, 10
    %237 = vst [vmem:[%s236] sm:%s235] %v233
    %s238 = scalar_lea.vmem [#allocation0], 48
    %v239 = vld [vmem:[%s238] sm:%s203]
    %s241 = ssub.s32 4, 1
    %s242 = scalar_lea.vmem %s1, 12
    %243 = vst [vmem:[%s242] sm:%s241] %v239
    %s244 = scalar_lea.vmem [#allocation0], 56
    %v245 = vld [vmem:[%s244] sm:%s203]
    %s247 = ssub.s32 4, 1
    %s248 = scalar_lea.vmem %s1, 14
    %249 = vst [vmem:[%s248] sm:%s247] %v245

// kernel: wrapper_forward.1
$region0: #{wrapper_forward.1}
  #allocation0 [shape = 'u32[]', space=smem, size = 0x4, offset = 0x4, fixed_abs, tag = 'smem constant byte address 0x4 - core index']
  #allocation1 [shape = 'u32[72,128]{1,0:T(1,128)}', space=vmem, size = 0x9000, scoped, tag = 'internal scratch']
  %s0 = inlined_call_operand.vmem [shape: f32[2,8,1024], index: 0, kind: input, shape index: {}]
  %s1 = inlined_call_operand.vmem [shape: f32[2,1024], index: 1, kind: input, shape index: {}]
  %s2 = inlined_call_operand.vmem [shape: bf16[1024,96], index: 2, kind: input, shape index: {}]
  %s3 = inlined_call_operand.vmem [shape: f32[1,96], index: 3, kind: input, shape index: {}]
  %s4 = inlined_call_operand.vmem [shape: f32[2,8,96], index: 4, kind: output, shape index: {}]
  %s5 = sld [smem:[#allocation0]]
  $region49: #{wrapper_forward.1} parent=0
    _
  %s7 = ssub.s32 1, %s5
  %s8 = scalar_select 0, %s7, %s5
  loop: start=0, step=1, limit=4
  $region2: #{wrapper_forward.1} parent=0 // loop_pre_header
    _
  $region3: #{wrapper_forward.1} parent=0 // loop_header
    %s10 = sphi 0, %s14
    %p11 = scmp.ge.s32.totalorder %s10, 4
    %s17 = sphi 0, %s29
    %s18 = sphi 0, %s25
    %s19 = sphi 0, %s17
    %s20 = sphi 0, %s18
    %s21 = sphi 0, %s19
    %s22 = sphi 0, %s20
    %s34 = sphi 0, %s36
    %s37 = sphi 0, %s34
    %s38 = sphi 0, %s37
    %s54 = sphi 0, %s38
    %s58 = sphi 0, %s58
    %s60 = sphi 0, %s58
    %s61 = sphi 0, %s60
    %s75 = sphi 0, %s61
    %s79 = sphi 0, %s79
    %s81 = sphi 0, %s79
    %s82 = sphi 0, %s81
    %s96 = sphi 0, %s82
    %s100 = sphi 0, %s100
    %s102 = sphi 0, %s100
    %s103 = sphi 0, %s102
    %s117 = sphi 0, %s103
    %s125 = sphi 0, %s127
    %s128 = sphi 0, %s125
    %s129 = sphi 0, %s128
    %s145 = sphi 0, %s129
  $region4: #{wrapper_forward.1} parent=0 // loop_header_branch
    %13 = sbr.rel (%p11) target = $region8
  $region5: #{wrapper_forward.1} parent=0 // loop_body
    %s15 = ssub.s32 %s10, 1
    %s16 = ssub.s32 %s10, 2
    %s23 = sadd.s32 1, %s18
    %p24 = scmp.ge.s32.totalorder %s23, 1
    %s25 = scalar_select %p24, 0, %s23
    %s26 = sadd.s32 1, %s17
    %s27 = scalar_select %p24, %s26, %s17
    %p28 = scmp.ge.s32.totalorder %s27, 2
    %s29 = scalar_select %p28, 0, %s27
    %s30 = ssub.s32 %s17, %s29
    %s31 = ssub.s32 %s18, %s25
    %s32 = sor.u32 %s30, %s31
    %p33 = scmp.eq.s32.totalorder %s32, 0
    %s35 = sadd.s32 %s34, 1
    %s36 = scalar_select %p33, %s34, %s35
    %p39 = pneg %p33
    %p40 = scmp.eq.s32.totalorder %s10, 1
    %p41 = por %p39, %p40
    %p42 = scmp.ne.s32.totalorder %s34, %s37
    %p43 = scmp.eq.s32.totalorder %s10, 0
    %p44 = por %p42, %p43
    %p45 = scmp.ne.s32.totalorder %s34, %s37
    %p46 = scmp.eq.s32.totalorder %s15, 1
    %p47 = por %p45, %p46
    %p48 = scmp.ne.s32.totalorder %s37, %s38
    %p49 = scmp.eq.s32.totalorder %s15, 0
    %p50 = por %p48, %p49
    %p51 = scmp.ne.s32.totalorder %s37, %s38
    %p52 = scmp.eq.s32.totalorder %s16, 1
    %p53 = por %p51, %p52
    %p55 = scmp.ne.s32.totalorder %s38, %s54
    %p56 = scmp.eq.s32.totalorder %s16, 0
    %p57 = por %p55, %p56
    %s59 = sadd.s32 %s58, 1
    %p62 = scmp.eq.s32.totalorder %s10, 1
    %p63 = scmp.ne.s32.totalorder %s58, %s60
    %p64 = scmp.eq.s32.totalorder %s10, 0
    %p65 = por %p63, %p64
    %p66 = scmp.ne.s32.totalorder %s58, %s60
    %p67 = scmp.eq.s32.totalorder %s15, 1
    %p68 = por %p66, %p67
    %p69 = scmp.ne.s32.totalorder %s60, %s61
    %p70 = scmp.eq.s32.totalorder %s15, 0
    %p71 = por %p69, %p70
    %p72 = scmp.ne.s32.totalorder %s60, %s61
    %p73 = scmp.eq.s32.totalorder %s16, 1
    %p74 = por %p72, %p73
    %p76 = scmp.ne.s32.totalorder %s61, %s75
    %p77 = scmp.eq.s32.totalorder %s16, 0
    %p78 = por %p76, %p77
    %s80 = sadd.s32 %s79, 1
    %p83 = scmp.eq.s32.totalorder %s10, 1
    %p84 = scmp.ne.s32.totalorder %s79, %s81
    %p85 = scmp.eq.s32.totalorder %s10, 0
    %p86 = por %p84, %p85
    %p87 = scmp.ne.s32.totalorder %s79, %s81
    %p88 = scmp.eq.s32.totalorder %s15, 1
    %p89 = por %p87, %p88
    %p90 = scmp.ne.s32.totalorder %s81, %s82
    %p91 = scmp.eq.s32.totalorder %s15, 0
    %p92 = por %p90, %p91
    %p93 = scmp.ne.s32.totalorder %s81, %s82
    %p94 = scmp.eq.s32.totalorder %s16, 1
    %p95 = por %p93, %p94
    %p97 = scmp.ne.s32.totalorder %s82, %s96
    %p98 = scmp.eq.s32.totalorder %s16, 0
    %p99 = por %p97, %p98
    %s101 = sadd.s32 %s100, 1
    %p104 = scmp.eq.s32.totalorder %s10, 1
    %p105 = scmp.ne.s32.totalorder %s100, %s102
    %p106 = scmp.eq.s32.totalorder %s10, 0
    %p107 = por %p105, %p106
    %p108 = scmp.ne.s32.totalorder %s100, %s102
    %p109 = scmp.eq.s32.totalorder %s15, 1
    %p110 = por %p108, %p109
    %p111 = scmp.ne.s32.totalorder %s102, %s103
    %p112 = scmp.eq.s32.totalorder %s15, 0
    %p113 = por %p111, %p112
    %p114 = scmp.ne.s32.totalorder %s102, %s103
    %p115 = scmp.eq.s32.totalorder %s16, 1
    %p116 = por %p114, %p115
    %p118 = scmp.ne.s32.totalorder %s103, %s117
    %p119 = scmp.eq.s32.totalorder %s16, 0
    %p120 = por %p118, %p119
    %s121 = ssub.s32 %s17, %s29
    %s122 = ssub.s32 %s18, %s25
    %s123 = sor.u32 %s121, %s122
    %p124 = scmp.eq.s32.totalorder %s123, 0
    %s126 = sadd.s32 %s125, 1
    %s127 = scalar_select %p124, %s125, %s126
    %p130 = pneg %p124
    %p131 = scmp.eq.s32.totalorder %s10, 1
    %p132 = por %p130, %p131
    %p133 = scmp.ne.s32.totalorder %s125, %s128
    %p134 = scmp.eq.s32.totalorder %s10, 0
    %p135 = por %p133, %p134
    %p136 = scmp.ne.s32.totalorder %s125, %s128
    %p137 = scmp.eq.s32.totalorder %s15, 1
    %p138 = por %p136, %p137
    %p139 = scmp.ne.s32.totalorder %s128, %s129
    %p140 = scmp.eq.s32.totalorder %s15, 0
    %p141 = por %p139, %p140
    %p142 = scmp.ne.s32.totalorder %s128, %s129
    %p143 = scmp.eq.s32.totalorder %s16, 1
    %p144 = por %p142, %p143
    %p146 = scmp.ne.s32.totalorder %s129, %s145
    %p147 = scmp.eq.s32.totalorder %s16, 0
    %p148 = por %p146, %p147
    %p149 = scmp.le.s32.totalorder 1, %s10
    %p150 = scmp.lt.s32.totalorder %s10, 3
    %p151 = pnand %p149, %p150
    %p152 = pneg %p151
    // Predicated region
    $region9: #{wrapper_forward.1} parent=5 // pred_check
      _
    $region10: #{wrapper_forward.1} parent=5 // pred_check_branch
      %154 = sbr.rel (%p151) target = $region12
    $region11: #{wrapper_forward.1} parent=5 // pred_region
      %s155 = ssub.s32 %s10, 1
      // Predicated region
      $region13: #{wrapper_forward.1} parent=11 // pred_check
        %p156 = pneg %p71
      $region14: #{wrapper_forward.1} parent=11 // pred_check_branch
        %158 = sbr.rel (%p156) target = $region16
      $region15: #{wrapper_forward.1} parent=11 // pred_region
        _
      $region16: #{wrapper_forward.1} parent=11 // pred_fallthru
        _
      // Predicated region
      $region17: #{wrapper_forward.1} parent=11 // pred_check
        %p159 = pneg %p92
      $region18: #{wrapper_forward.1} parent=11 // pred_check_branch
        %161 = sbr.rel (%p159) target = $region20
      $region19: #{wrapper_forward.1} parent=11 // pred_region
        _
      $region20: #{wrapper_forward.1} parent=11 // pred_fallthru
        _
      // Predicated region
      $region21: #{wrapper_forward.1} parent=11 // pred_check
        %p162 = pneg %p113
      $region22: #{wrapper_forward.1} parent=11 // pred_check_branch
        %164 = sbr.rel (%p162) target = $region24
      $region23: #{wrapper_forward.1} parent=11 // pred_region
        _
      $region24: #{wrapper_forward.1} parent=11 // pred_fallthru
        _
    $region12: #{wrapper_forward.1} parent=5 // pred_fallthru
      _
    %p165 = scmp.lt.s32.totalorder %s10, 2
    // Predicated region
    $region25: #{wrapper_forward.1} parent=5 // pred_check
      %p166 = pneg %p165
    $region26: #{wrapper_forward.1} parent=5 // pred_check_branch
      %168 = sbr.rel (%p166) target = $region28
    $region27: #{wrapper_forward.1} parent=5 // pred_region
      // Predicated region
      $region29: #{wrapper_forward.1} parent=27 // pred_check
        %p169 = pneg %p44
      $region30: #{wrapper_forward.1} parent=27 // pred_check_branch
        %171 = sbr.rel (%p169) target = $region32
      $region31: #{wrapper_forward.1} parent=27 // pred_region
        %p172 = scmp.lt.s32.totalorder %s17, 1
        %s173 = scalar_select %p172, %s17, 1
        %p174 = scmp.lt.s32.totalorder %s18, 0
        %s175 = scalar_select %p174, %s18, 0
        %s176 = smul.addr %s175, 8
        %s177 = smul.addr %s173, 8
        %s178 = sadd.s32 %s176, %s177
        %s179 = smul.addr %s178, 8
        %s180 = scalar_lea.vmem %s0, %s179
      $region32: #{wrapper_forward.1} parent=27 // pred_fallthru
        _
    $region28: #{wrapper_forward.1} parent=5 // pred_fallthru
      _
    %p181 = scmp.le.s32.totalorder 1, %s10
    %p182 = scmp.lt.s32.totalorder %s10, 3
    %p183 = pnand %p181, %p182
    %p184 = pneg %p183
    // Predicated region
    $region33: #{wrapper_forward.1} parent=5 // pred_check
      _
    $region34: #{wrapper_forward.1} parent=5 // pred_check_branch
      %186 = sbr.rel (%p183) target = $region36
    $region35: #{wrapper_forward.1} parent=5 // pred_region
      %s187 = ssub.s32 %s10, 1
      %p188 = scmp.lt.s32.totalorder %s19, 1
      %s189 = scalar_select %p188, %s19, 1
      %p190 = scmp.lt.s32.totalorder %s20, 0
      %s191 = scalar_select %p190, %s20, 0
      %s192 = smul.addr %s191, 8
      %s193 = smul.addr %s189, 8
      %s194 = sadd.s32 %s192, %s193
      %s195 = smul.addr %s194, 8
      %s196 = scalar_lea.vmem %s0, %s195
      %p197 = pneg %p50
      %p198 = pneg %p47
      %p199 = pneg %p71
      %p200 = pneg %p68
      %p201 = pneg %p92
      %p202 = pneg %p89
      %p203 = pneg %p113
      %p204 = pneg %p110
      %p205 = pneg %p141
      %p206 = pneg %p138
      %p207 = scmp.lt.s32.totalorder %s19, 1
      %s208 = scalar_select %p207, %s19, 1
      %p209 = scmp.lt.s32.totalorder %s20, 0
      %s210 = scalar_select %p209, %s20, 0
      %s211 = sadd.s32 %s210, %s208
      %s212 = smul.addr %s211, 8
      %s213 = scalar_lea.vmem %s4, %s212
      %p214 = scmp.lt.s32.totalorder %s19, 1
      %s215 = scalar_select %p214, %s19, 1
      %p216 = scmp.lt.s32.totalorder %s20, 0
      %s217 = scalar_select %p216, %s20, 0
      %s218 = smul.addr %s217, 8
      %s219 = smul.addr %s215, 8
      %s220 = sadd.s32 %s218, %s219
      %s221 = smul.addr %s220, 8
      %s222 = scalar_lea.vmem %s0, %s221
      %p223 = scmp.lt.s32.totalorder %s19, 1
      %s224 = scalar_select %p223, %s19, 1
      %p225 = scmp.lt.s32.totalorder %s20, 0
      %s226 = scalar_select %p225, %s20, 0
      %s227 = sadd.s32 %s226, %s224
      %s228 = smul.addr %s227, 8
      %s229 = scalar_lea.vmem %s4, %s228
      %v230 = vld [vmem:[%s222] sm:$0xff]
      %v231 = vld [vmem:[%s222 + $0x8] sm:$0xff]
      %v232 = vld [vmem:[%s222 + $0x10] sm:$0xff]
      %v233 = vld [vmem:[%s222 + $0x18] sm:$0xff]
      %v234 = vld [vmem:[%s222 + $0x20] sm:$0xff]
      %v235 = vld [vmem:[%s222 + $0x28] sm:$0xff]
      %v236 = vld [vmem:[%s222 + $0x30] sm:$0xff]
      %v237 = vld [vmem:[%s222 + $0x38] sm:$0xff]
      %v238 = vmul.f32 %v230, 21.166666
      %v239 = vmul.f32 %v231, 21.166666
      %v240 = vmul.f32 %v232, 21.166666
      %v241 = vmul.f32 %v233, 21.166666
      %v242 = vmul.f32 %v234, 21.166666
      %v243 = vmul.f32 %v235, 21.166666
      %v244 = vmul.f32 %v236, 21.166666
      %v245 = vmul.f32 %v237, 21.166666
      %v246 = vround.ne.pseudo %v238
      %v247 = vround.ne.pseudo %v239
      %v248 = vround.ne.pseudo %v240
      %v249 = vround.ne.pseudo %v241
      %v250 = vround.ne.pseudo %v242
      %v251 = vround.ne.pseudo %v243
      %v252 = vround.ne.pseudo %v244
      %v253 = vround.ne.pseudo %v245
      %v254 = vmax.f32 %v246, -128.0
      %v255 = vmax.f32 %v247, -128.0
      %v256 = vmax.f32 %v248, -128.0
      %v257 = vmax.f32 %v249, -128.0
      %v258 = vmax.f32 %v250, -128.0
      %v259 = vmax.f32 %v251, -128.0
      %v260 = vmax.f32 %v252, -128.0
      %v261 = vmax.f32 %v253, -128.0
      %v262 = vmin.f32 %v254, 127.0
      %v263 = vmin.f32 %v255, 127.0
      %v264 = vmin.f32 %v256, 127.0
      %v265 = vmin.f32 %v257, 127.0
      %v266 = vmin.f32 %v258, 127.0
      %v267 = vmin.f32 %v259, 127.0
      %v268 = vmin.f32 %v260, 127.0
      %v269 = vmin.f32 %v261, 127.0
      %s270 = sshra.s32 %s19, 1
      %s271 = sand.u32 %s19, 1
      %s272 = sshra.s32 %s19, 1
      %s273 = sand.u32 %s19, 1
      %s274 = smul.u32 %s270, 8
      %s275 = smul.u32 %s274, 2
      %s276 = sadd.s32 %s275, %s273
      %s277 = scalar_lea.vmem %s1, %s276
      %v278 = vld [vmem:[%s277] ss:$2 sm:$0xff]
      %v280 = vperm.slane %v278, 0
      %v281 = vperm.slane %v278, 1
      %v282 = vperm.slane %v278, 2
      %v283 = vperm.slane %v278, 3
      %v284 = vperm.slane %v278, 4
      %v285 = vperm.slane %v278, 5
      %v286 = vperm.slane %v278, 6
      %v287 = vperm.slane %v278, 7
      %v296 = vmul.f32 %v262, %v280
      %v297 = vmul.f32 %v263, %v281
      %v298 = vmul.f32 %v264, %v282
      %v299 = vmul.f32 %v265, %v283
      %v300 = vmul.f32 %v266, %v284
      %v301 = vmul.f32 %v267, %v285
      %v302 = vmul.f32 %v268, %v286
      %v303 = vmul.f32 %v269, %v287
      %v304 = vpack.c.bf16 %v296, %v296
      %v305 = vpack.c.bf16 %v297, %v297
      %v306 = vpack.c.bf16 %v298, %v298
      %v307 = vpack.c.bf16 %v299, %v299
      %v308 = vpack.c.bf16 %v300, %v300
      %v309 = vpack.c.bf16 %v301, %v301
      %v310 = vpack.c.bf16 %v302, %v302
      %v311 = vpack.c.bf16 %v303, %v303
      %v312 = vld [vmem:[%s2] sm:$0xf]
      %v313 = vld [vmem:[%s2 + $0x4] sm:$0xf]
      %v314 = vld [vmem:[%s2 + $0x8] sm:$0xf]
      %v315 = vld [vmem:[%s2 + $0xc] sm:$0xf]
      %v316 = vld [vmem:[%s2 + $0x10] sm:$0xf]
      %v317 = vld [vmem:[%s2 + $0x14] sm:$0xf]
      %v318 = vld [vmem:[%s2 + $0x18] sm:$0xf]
      %v319 = vld [vmem:[%s2 + $0x1c] sm:$0xf]
      %v320 = vld [vmem:[%s2 + $0x20] sm:$0xf]
      %v321 = vld [vmem:[%s2 + $0x24] sm:$0xf]
      %v322 = vld [vmem:[%s2 + $0x28] sm:$0xf]
      %v323 = vld [vmem:[%s2 + $0x2c] sm:$0xf]
      %v324 = vld [vmem:[%s2 + $0x30] sm:$0xf]
      %v325 = vld [vmem:[%s2 + $0x34] sm:$0xf]
      %v326 = vld [vmem:[%s2 + $0x38] sm:$0xf]
      %v327 = vld [vmem:[%s2 + $0x3c] sm:$0xf]
      %v328 = vld [vmem:[%s2 + $0x40] sm:$0xf]
      %v329 = vld [vmem:[%s2 + $0x44] sm:$0xf]
      %v330 = vld [vmem:[%s2 + $0x48] sm:$0xf]
      %v331 = vld [vmem:[%s2 + $0x4c] sm:$0xf]
      %v332 = vld [vmem:[%s2 + $0x50] sm:$0xf]
      %v333 = vld [vmem:[%s2 + $0x54] sm:$0xf]
      %v334 = vld [vmem:[%s2 + $0x58] sm:$0xf]
      %v335 = vld [vmem:[%s2 + $0x5c] sm:$0xf]
      %v336 = vld [vmem:[%s2 + $0x60] sm:$0xf]
      %v337 = vld [vmem:[%s2 + $0x64] sm:$0xf]
      %v338 = vld [vmem:[%s2 + $0x68] sm:$0xf]
      %v339 = vld [vmem:[%s2 + $0x6c] sm:$0xf]
      %v340 = vld [vmem:[%s2 + $0x70] sm:$0xf]
      %v341 = vld [vmem:[%s2 + $0x74] sm:$0xf]
      %v342 = vld [vmem:[%s2 + $0x78] sm:$0xf]
      %v343 = vld [vmem:[%s2 + $0x7c] sm:$0xf]
      %v344 = vld [vmem:[%s2 + $0x80] sm:$0xf]
      %v345 = vld [vmem:[%s2 + $0x84] sm:$0xf]
      %v346 = vld [vmem:[%s2 + $0x88] sm:$0xf]
      %v347 = vld [vmem:[%s2 + $0x8c] sm:$0xf]
      %v348 = vld [vmem:[%s2 + $0x90] sm:$0xf]
      %v349 = vld [vmem:[%s2 + $0x94] sm:$0xf]
      %v350 = vld [vmem:[%s2 + $0x98] sm:$0xf]
      %v351 = vld [vmem:[%s2 + $0x9c] sm:$0xf]
      %v352 = vld [vmem:[%s2 + $0xa0] sm:$0xf]
      %v353 = vld [vmem:[%s2 + $0xa4] sm:$0xf]
      %v354 = vld [vmem:[%s2 + $0xa8] sm:$0xf]
      %v355 = vld [vmem:[%s2 + $0xac] sm:$0xf]
      %v356 = vld [vmem:[%s2 + $0xb0] sm:$0xf]
      %v357 = vld [vmem:[%s2 + $0xb4] sm:$0xf]
      %v358 = vld [vmem:[%s2 + $0xb8] sm:$0xf]
      %v359 = vld [vmem:[%s2 + $0xbc] sm:$0xf]
      %v360 = vld [vmem:[%s2 + $0xc0] sm:$0xf]
      %v361 = vld [vmem:[%s2 + $0xc4] sm:$0xf]
      %v362 = vld [vmem:[%s2 + $0xc8] sm:$0xf]
      %v363 = vld [vmem:[%s2 + $0xcc] sm:$0xf]
      %v364 = vld [vmem:[%s2 + $0xd0] sm:$0xf]
      %v365 = vld [vmem:[%s2 + $0xd4] sm:$0xf]
      %v366 = vld [vmem:[%s2 + $0xd8] sm:$0xf]
      %v367 = vld [vmem:[%s2 + $0xdc] sm:$0xf]
      %v368 = vld [vmem:[%s2 + $0xe0] sm:$0xf]
      %v369 = vld [vmem:[%s2 + $0xe4] sm:$0xf]
      %v370 = vld [vmem:[%s2 + $0xe8] sm:$0xf]
      %v371 = vld [vmem:[%s2 + $0xec] sm:$0xf]
      %v372 = vld [vmem:[%s2 + $0xf0] sm:$0xf]
      %v373 = vld [vmem:[%s2 + $0xf4] sm:$0xf]
      %v374 = vld [vmem:[%s2 + $0xf8] sm:$0xf]
      %v375 = vld [vmem:[%s2 + $0xfc] sm:$0xf]
      %v376 = vld [vmem:[%s2 + $0x100] sm:$0xf]
      %v377 = vld [vmem:[%s2 + $0x104] sm:$0xf]
      %v378 = vld [vmem:[%s2 + $0x108] sm:$0xf]
      %v379 = vld [vmem:[%s2 + $0x10c] sm:$0xf]
      %v380 = vld [vmem:[%s2 + $0x110] sm:$0xf]
      %v381 = vld [vmem:[%s2 + $0x114] sm:$0xf]
      %v382 = vld [vmem:[%s2 + $0x118] sm:$0xf]
      %v383 = vld [vmem:[%s2 + $0x11c] sm:$0xf]
      %v384 = vld [vmem:[%s2 + $0x120] sm:$0xf]
      %v385 = vld [vmem:[%s2 + $0x124] sm:$0xf]
      %v386 = vld [vmem:[%s2 + $0x128] sm:$0xf]
      %v387 = vld [vmem:[%s2 + $0x12c] sm:$0xf]
      %v388 = vld [vmem:[%s2 + $0x130] sm:$0xf]
      %v389 = vld [vmem:[%s2 + $0x134] sm:$0xf]
      %v390 = vld [vmem:[%s2 + $0x138] sm:$0xf]
      %v391 = vld [vmem:[%s2 + $0x13c] sm:$0xf]
      %v392 = vld [vmem:[%s2 + $0x140] sm:$0xf]
      %v393 = vld [vmem:[%s2 + $0x144] sm:$0xf]
      %v394 = vld [vmem:[%s2 + $0x148] sm:$0xf]
      %v395 = vld [vmem:[%s2 + $0x14c] sm:$0xf]
      %v396 = vld [vmem:[%s2 + $0x150] sm:$0xf]
      %v397 = vld [vmem:[%s2 + $0x154] sm:$0xf]
      %v398 = vld [vmem:[%s2 + $0x158] sm:$0xf]
      %v399 = vld [vmem:[%s2 + $0x15c] sm:$0xf]
      %v400 = vld [vmem:[%s2 + $0x160] sm:$0xf]
      %v401 = vld [vmem:[%s2 + $0x164] sm:$0xf]
      %v402 = vld [vmem:[%s2 + $0x168] sm:$0xf]
      %v403 = vld [vmem:[%s2 + $0x16c] sm:$0xf]
      %v404 = vld [vmem:[%s2 + $0x170] sm:$0xf]
      %v405 = vld [vmem:[%s2 + $0x174] sm:$0xf]
      %v406 = vld [vmem:[%s2 + $0x178] sm:$0xf]
      %v407 = vld [vmem:[%s2 + $0x17c] sm:$0xf]
      %v408 = vld [vmem:[%s2 + $0x180] sm:$0xf]
      %v409 = vld [vmem:[%s2 + $0x184] sm:$0xf]
      %v410 = vld [vmem:[%s2 + $0x188] sm:$0xf]
      %v411 = vld [vmem:[%s2 + $0x18c] sm:$0xf]
      %v412 = vld [vmem:[%s2 + $0x190] sm:$0xf]
      %v413 = vld [vmem:[%s2 + $0x194] sm:$0xf]
      %v414 = vld [vmem:[%s2 + $0x198] sm:$0xf]
      %v415 = vld [vmem:[%s2 + $0x19c] sm:$0xf]
      %v416 = vld [vmem:[%s2 + $0x1a0] sm:$0xf]
      %v417 = vld [vmem:[%s2 + $0x1a4] sm:$0xf]
      %v418 = vld [vmem:[%s2 + $0x1a8] sm:$0xf]
      %v419 = vld [vmem:[%s2 + $0x1ac] sm:$0xf]
      %v420 = vld [vmem:[%s2 + $0x1b0] sm:$0xf]
      %v421 = vld [vmem:[%s2 + $0x1b4] sm:$0xf]
      %v422 = vld [vmem:[%s2 + $0x1b8] sm:$0xf]
      %v423 = vld [vmem:[%s2 + $0x1bc] sm:$0xf]
      %v424 = vld [vmem:[%s2 + $0x1c0] sm:$0xf]
      %v425 = vld [vmem:[%s2 + $0x1c4] sm:$0xf]
      %v426 = vld [vmem:[%s2 + $0x1c8] sm:$0xf]
      %v427 = vld [vmem:[%s2 + $0x1cc] sm:$0xf]
      %v428 = vld [vmem:[%s2 + $0x1d0] sm:$0xf]
      %v429 = vld [vmem:[%s2 + $0x1d4] sm:$0xf]
      %v430 = vld [vmem:[%s2 + $0x1d8] sm:$0xf]
      %v431 = vld [vmem:[%s2 + $0x1dc] sm:$0xf]
      %v432 = vld [vmem:[%s2 + $0x1e0] sm:$0xf]
      %v433 = vld [vmem:[%s2 + $0x1e4] sm:$0xf]
      %v434 = vld [vmem:[%s2 + $0x1e8] sm:$0xf]
      %v435 = vld [vmem:[%s2 + $0x1ec] sm:$0xf]
      %v436 = vld [vmem:[%s2 + $0x1f0] sm:$0xf]
      %v437 = vld [vmem:[%s2 + $0x1f4] sm:$0xf]
      %v438 = vld [vmem:[%s2 + $0x1f8] sm:$0xf]
      %v439 = vld [vmem:[%s2 + $0x1fc] sm:$0xf]
      %v440 = vld [vmem:[%s3] sm:$0x1]
      %v442 = vperm.slane %v440, 0
      %v572 = vunpack.c.l.b16 %v312
      %v573 = vunpack.c.l.b16 %v313
      %v574 = vunpack.c.l.b16 %v314
      %v575 = vunpack.c.l.b16 %v315
      %v576 = vunpack.c.l.b16 %v316
      %v577 = vunpack.c.l.b16 %v317
      %v578 = vunpack.c.l.b16 %v318
      %v579 = vunpack.c.l.b16 %v319
      %v580 = vunpack.c.l.b16 %v320
      %v581 = vunpack.c.l.b16 %v321
      %v582 = vunpack.c.l.b16 %v322
      %v583 = vunpack.c.l.b16 %v323
      %v584 = vunpack.c.l.b16 %v324
      %v585 = vunpack.c.l.b16 %v325
      %v586 = vunpack.c.l.b16 %v326
      %v587 = vunpack.c.l.b16 %v327
      %v588 = vunpack.c.l.b16 %v328
      %v589 = vunpack.c.l.b16 %v329
      %v590 = vunpack.c.l.b16 %v330
      %v591 = vunpack.c.l.b16 %v331
      %v592 = vunpack.c.l.b16 %v332
      %v593 = vunpack.c.l.b16 %v333
      %v594 = vunpack.c.l.b16 %v334
      %v595 = vunpack.c.l.b16 %v335
      %v596 = vunpack.c.l.b16 %v336
      %v597 = vunpack.c.l.b16 %v337
      %v598 = vunpack.c.l.b16 %v338
      %v599 = vunpack.c.l.b16 %v339
      %v600 = vunpack.c.l.b16 %v340
      %v601 = vunpack.c.l.b16 %v341
      %v602 = vunpack.c.l.b16 %v342
      %v603 = vunpack.c.l.b16 %v343
      %v604 = vunpack.c.l.b16 %v344
      %v605 = vunpack.c.l.b16 %v345
      %v606 = vunpack.c.l.b16 %v346
      %v607 = vunpack.c.l.b16 %v347
      %v608 = vunpack.c.l.b16 %v348
      %v609 = vunpack.c.l.b16 %v349
      %v610 = vunpack.c.l.b16 %v350
      %v611 = vunpack.c.l.b16 %v351
      %v612 = vunpack.c.l.b16 %v352
      %v613 = vunpack.c.l.b16 %v353
      %v614 = vunpack.c.l.b16 %v354
      %v615 = vunpack.c.l.b16 %v355
      %v616 = vunpack.c.l.b16 %v356
      %v617 = vunpack.c.l.b16 %v357
      %v618 = vunpack.c.l.b16 %v358
      %v619 = vunpack.c.l.b16 %v359
      %v620 = vunpack.c.l.b16 %v360
      %v621 = vunpack.c.l.b16 %v361
      %v622 = vunpack.c.l.b16 %v362
      %v623 = vunpack.c.l.b16 %v363
      %v624 = vunpack.c.l.b16 %v364
      %v625 = vunpack.c.l.b16 %v365
      %v626 = vunpack.c.l.b16 %v366
      %v627 = vunpack.c.l.b16 %v367
      %v628 = vunpack.c.l.b16 %v368
      %v629 = vunpack.c.l.b16 %v369
      %v630 = vunpack.c.l.b16 %v370
      %v631 = vunpack.c.l.b16 %v371
      %v632 = vunpack.c.l.b16 %v372
      %v633 = vunpack.c.l.b16 %v373
      %v634 = vunpack.c.l.b16 %v374
      %v635 = vunpack.c.l.b16 %v375
      %v636 = vunpack.c.l.b16 %v376
      %v637 = vunpack.c.l.b16 %v377
      %v638 = vunpack.c.l.b16 %v378
      %v639 = vunpack.c.l.b16 %v379
      %v640 = vunpack.c.l.b16 %v380
      %v641 = vunpack.c.l.b16 %v381
      %v642 = vunpack.c.l.b16 %v382
      %v643 = vunpack.c.l.b16 %v383
      %v644 = vunpack.c.l.b16 %v384
      %v645 = vunpack.c.l.b16 %v385
      %v646 = vunpack.c.l.b16 %v386
      %v647 = vunpack.c.l.b16 %v387
      %v648 = vunpack.c.l.b16 %v388
      %v649 = vunpack.c.l.b16 %v389
      %v650 = vunpack.c.l.b16 %v390
      %v651 = vunpack.c.l.b16 %v391
      %v652 = vunpack.c.l.b16 %v392
      %v653 = vunpack.c.l.b16 %v393
      %v654 = vunpack.c.l.b16 %v394
      %v655 = vunpack.c.l.b16 %v395
      %v656 = vunpack.c.l.b16 %v396
      %v657 = vunpack.c.l.b16 %v397
      %v658 = vunpack.c.l.b16 %v398
      %v659 = vunpack.c.l.b16 %v399
      %v660 = vunpack.c.l.b16 %v400
      %v661 = vunpack.c.l.b16 %v401
      %v662 = vunpack.c.l.b16 %v402
      %v663 = vunpack.c.l.b16 %v403
      %v664 = vunpack.c.l.b16 %v404
      %v665 = vunpack.c.l.b16 %v405
      %v666 = vunpack.c.l.b16 %v406
      %v667 = vunpack.c.l.b16 %v407
      %v668 = vunpack.c.l.b16 %v408
      %v669 = vunpack.c.l.b16 %v409
      %v670 = vunpack.c.l.b16 %v410
      %v671 = vunpack.c.l.b16 %v411
      %v672 = vunpack.c.l.b16 %v412
      %v673 = vunpack.c.l.b16 %v413
      %v674 = vunpack.c.l.b16 %v414
      %v675 = vunpack.c.l.b16 %v415
      %v676 = vunpack.c.l.b16 %v416
      %v677 = vunpack.c.l.b16 %v417
      %v678 = vunpack.c.l.b16 %v418
      %v679 = vunpack.c.l.b16 %v419
      %v680 = vunpack.c.l.b16 %v420
      %v681 = vunpack.c.l.b16 %v421
      %v682 = vunpack.c.l.b16 %v422
      %v683 = vunpack.c.l.b16 %v423
      %v684 = vunpack.c.l.b16 %v424
      %v685 = vunpack.c.l.b16 %v425
      %v686 = vunpack.c.l.b16 %v426
      %v687 = vunpack.c.l.b16 %v427
      %v688 = vunpack.c.l.b16 %v428
      %v689 = vunpack.c.l.b16 %v429
      %v690 = vunpack.c.l.b16 %v430
      %v691 = vunpack.c.l.b16 %v431
      %v692 = vunpack.c.l.b16 %v432
      %v693 = vunpack.c.l.b16 %v433
      %v694 = vunpack.c.l.b16 %v434
      %v695 = vunpack.c.l.b16 %v435
      %v696 = vunpack.c.l.b16 %v436
      %v697 = vunpack.c.l.b16 %v437
      %v698 = vunpack.c.l.b16 %v438
      %v699 = vunpack.c.l.b16 %v439
      %v700 = vpack.c.b16 %v573, %v572
      %v701 = vpack.c.b16 %v575, %v574
      %v702 = vpack.c.b16 %v577, %v576
      %v703 = vpack.c.b16 %v579, %v578
      %v704 = vpack.c.b16 %v581, %v580
      %v705 = vpack.c.b16 %v583, %v582
      %v706 = vpack.c.b16 %v585, %v584
      %v707 = vpack.c.b16 %v587, %v586
      %v708 = vpack.c.b16 %v589, %v588
      %v709 = vpack.c.b16 %v591, %v590
      %v710 = vpack.c.b16 %v593, %v592
      %v711 = vpack.c.b16 %v595, %v594
      %v712 = vpack.c.b16 %v597, %v596
      %v713 = vpack.c.b16 %v599, %v598
      %v714 = vpack.c.b16 %v601, %v600
      %v715 = vpack.c.b16 %v603, %v602
      %v716 = vpack.c.b16 %v605, %v604
      %v717 = vpack.c.b16 %v607, %v606
      %v718 = vpack.c.b16 %v609, %v608
      %v719 = vpack.c.b16 %v611, %v610
      %v720 = vpack.c.b16 %v613, %v612
      %v721 = vpack.c.b16 %v615, %v614
      %v722 = vpack.c.b16 %v617, %v616
      %v723 = vpack.c.b16 %v619, %v618
      %v724 = vpack.c.b16 %v621, %v620
      %v725 = vpack.c.b16 %v623, %v622
      %v726 = vpack.c.b16 %v625, %v624
      %v727 = vpack.c.b16 %v627, %v626
      %v728 = vpack.c.b16 %v629, %v628
      %v729 = vpack.c.b16 %v631, %v630
      %v730 = vpack.c.b16 %v633, %v632
      %v731 = vpack.c.b16 %v635, %v634
      %v732 = vpack.c.b16 %v637, %v636
      %v733 = vpack.c.b16 %v639, %v638
      %v734 = vpack.c.b16 %v641, %v640
      %v735 = vpack.c.b16 %v643, %v642
      %v736 = vpack.c.b16 %v645, %v644
      %v737 = vpack.c.b16 %v647, %v646
      %v738 = vpack.c.b16 %v649, %v648
      %v739 = vpack.c.b16 %v651, %v650
      %v740 = vpack.c.b16 %v653, %v652
      %v741 = vpack.c.b16 %v655, %v654
      %v742 = vpack.c.b16 %v657, %v656
      %v743 = vpack.c.b16 %v659, %v658
      %v744 = vpack.c.b16 %v661, %v660
      %v745 = vpack.c.b16 %v663, %v662
      %v746 = vpack.c.b16 %v665, %v664
      %v747 = vpack.c.b16 %v667, %v666
      %v748 = vpack.c.b16 %v669, %v668
      %v749 = vpack.c.b16 %v671, %v670
      %v750 = vpack.c.b16 %v673, %v672
      %v751 = vpack.c.b16 %v675, %v674
      %v752 = vpack.c.b16 %v677, %v676
      %v753 = vpack.c.b16 %v679, %v678
      %v754 = vpack.c.b16 %v681, %v680
      %v755 = vpack.c.b16 %v683, %v682
      %v756 = vpack.c.b16 %v685, %v684
      %v757 = vpack.c.b16 %v687, %v686
      %v758 = vpack.c.b16 %v689, %v688
      %v759 = vpack.c.b16 %v691, %v690
      %v760 = vpack.c.b16 %v693, %v692
      %v761 = vpack.c.b16 %v695, %v694
      %v762 = vpack.c.b16 %v697, %v696
      %v763 = vpack.c.b16 %v699, %v698
      %828 = vmatpush.bf16.msra.mxu0 %v707
      %829 = vmatpush.bf16.msra.mxu0 %v706
      %830 = vmatpush.bf16.msra.mxu0 %v705
      %831 = vmatpush.bf16.msra.mxu0 %v704
      %832 = vmatpush.bf16.msra.mxu0 %v703
      %833 = vmatpush.bf16.msra.mxu0 %v702
      %834 = vmatpush.bf16.msra.mxu0 %v701
      %835 = vmatpush.bf16.msra.mxu0 %v700
      %836 = vmatmul.bf16.gmra.mxu0 %v304
      %v837 = vpop.f32.mrf.mxu0
      %v838 = vadd.f32 %v442, %v837
      %v839 = vpop.f32.mrf.mxu0
      %840 = vdwg.mxu0
      %841 = vmatpush.bf16.msra.mxu0 %v715
      %842 = vmatpush.bf16.msra.mxu0 %v714
      %843 = vmatpush.bf16.msra.mxu0 %v713
      %844 = vmatpush.bf16.msra.mxu0 %v712
      %845 = vmatpush.bf16.msra.mxu0 %v711
      %846 = vmatpush.bf16.msra.mxu0 %v710
      %847 = vmatpush.bf16.msra.mxu0 %v709
      %848 = vmatpush.bf16.msra.mxu0 %v708
      %849 = vmatmul.bf16.gmra.mxu0 %v305
      %v850 = vpop.f32.mrf.mxu0
      %v851 = vadd.f32 %v838, %v850
      %v852 = vpop.f32.mrf.mxu0
      %853 = vdwg.mxu0
      %854 = vmatpush.bf16.msra.mxu0 %v723
      %855 = vmatpush.bf16.msra.mxu0 %v722
      %856 = vmatpush.bf16.msra.mxu0 %v721
      %857 = vmatpush.bf16.msra.mxu0 %v720
      %858 = vmatpush.bf16.msra.mxu0 %v719
      %859 = vmatpush.bf16.msra.mxu0 %v718
      %860 = vmatpush.bf16.msra.mxu0 %v717
      %861 = vmatpush.bf16.msra.mxu0 %v716
      %862 = vmatmul.bf16.gmra.mxu0 %v306
      %v863 = vpop.f32.mrf.mxu0
      %v864 = vadd.f32 %v851, %v863
      %v865 = vpop.f32.mrf.mxu0
      %866 = vdwg.mxu0
      %867 = vmatpush.bf16.msra.mxu0 %v731
      %868 = vmatpush.bf16.msra.mxu0 %v730
      %869 = vmatpush.bf16.msra.mxu0 %v729
      %870 = vmatpush.bf16.msra.mxu0 %v728
      %871 = vmatpush.bf16.msra.mxu0 %v727
      %872 = vmatpush.bf16.msra.mxu0 %v726
      %873 = vmatpush.bf16.msra.mxu0 %v725
      %874 = vmatpush.bf16.msra.mxu0 %v724
      %875 = vmatmul.bf16.gmra.mxu0 %v307
      %v876 = vpop.f32.mrf.mxu0
      %v877 = vadd.f32 %v864, %v876
      %v878 = vpop.f32.mrf.mxu0
      %879 = vdwg.mxu0
      %880 = vmatpush.bf16.msra.mxu0 %v739
      %881 = vmatpush.bf16.msra.mxu0 %v738
      %882 = vmatpush.bf16.msra.mxu0 %v737
      %883 = vmatpush.bf16.msra.mxu0 %v736
      %884 = vmatpush.bf16.msra.mxu0 %v735
      %885 = vmatpush.bf16.msra.mxu0 %v734
      %886 = vmatpush.bf16.msra.mxu0 %v733
      %887 = vmatpush.bf16.msra.mxu0 %v732
      %888 = vmatmul.bf16.gmra.mxu0 %v308
      %v889 = vpop.f32.mrf.mxu0
      %v890 = vadd.f32 %v877, %v889
      %v891 = vpop.f32.mrf.mxu0
      %892 = vdwg.mxu0
      %893 = vmatpush.bf16.msra.mxu0 %v747
      %894 = vmatpush.bf16.msra.mxu0 %v746
      %895 = vmatpush.bf16.msra.mxu0 %v745
      %896 = vmatpush.bf16.msra.mxu0 %v744
      %897 = vmatpush.bf16.msra.mxu0 %v743
      %898 = vmatpush.bf16.msra.mxu0 %v742
      %899 = vmatpush.bf16.msra.mxu0 %v741
      %900 = vmatpush.bf16.msra.mxu0 %v740
      %901 = vmatmul.bf16.gmra.mxu0 %v309
      %v902 = vpop.f32.mrf.mxu0
      %v903 = vadd.f32 %v890, %v902
      %v904 = vpop.f32.mrf.mxu0
      %905 = vdwg.mxu0
      %906 = vmatpush.bf16.msra.mxu0 %v755
      %907 = vmatpush.bf16.msra.mxu0 %v754
      %908 = vmatpush.bf16.msra.mxu0 %v753
      %909 = vmatpush.bf16.msra.mxu0 %v752
      %910 = vmatpush.bf16.msra.mxu0 %v751
      %911 = vmatpush.bf16.msra.mxu0 %v750
      %912 = vmatpush.bf16.msra.mxu0 %v749
      %913 = vmatpush.bf16.msra.mxu0 %v748
      %914 = vmatmul.bf16.gmra.mxu0 %v310
      %v915 = vpop.f32.mrf.mxu0
      %v916 = vadd.f32 %v903, %v915
      %v917 = vpop.f32.mrf.mxu0
      %918 = vdwg.mxu0
      %919 = vmatpush.bf16.msra.mxu0 %v763
      %920 = vmatpush.bf16.msra.mxu0 %v762
      %921 = vmatpush.bf16.msra.mxu0 %v761
      %922 = vmatpush.bf16.msra.mxu0 %v760
      %923 = vmatpush.bf16.msra.mxu0 %v759
      %924 = vmatpush.bf16.msra.mxu0 %v758
      %925 = vmatpush.bf16.msra.mxu0 %v757
      %926 = vmatpush.bf16.msra.mxu0 %v756
      %927 = vmatmul.bf16.gmra.mxu0 %v311
      %v928 = vpop.f32.mrf.mxu0
      %v929 = vadd.f32 %v916, %v928
      %v930 = vpop.f32.mrf.mxu0
      %931 = vdwg.mxu0
      %v932 = vmul.f32 %v929, 15.875
      %v933 = vround.ne.pseudo %v932
      %v934 = vmax.f32 %v933, -128.0
      %v935 = vmin.f32 %v934, 127.0
      %v936 = vmul.f32 %v935, 0.062992126
      %vm937 = vcmask 785408
      %938 = vst.msk [vmem:[%s229] sm:$0xff] %vm937, %v936
      %p939 = scmp.lt.s32.totalorder %s19, 1
      %s940 = scalar_select %p939, %s19, 1
      %p941 = scmp.lt.s32.totalorder %s20, 0
      %s942 = scalar_select %p941, %s20, 0
      %s943 = sadd.s32 %s942, %s940
      %s944 = smul.addr %s943, 8
      %s945 = scalar_lea.vmem %s4, %s944
      // Predicated region
      $region37: #{wrapper_forward.1} parent=35 // pred_check
        %p946 = pneg %p138
      $region38: #{wrapper_forward.1} parent=35 // pred_check_branch
        %948 = sbr.rel (%p946) target = $region40
      $region39: #{wrapper_forward.1} parent=35 // pred_region
        _
      $region40: #{wrapper_forward.1} parent=35 // pred_fallthru
        _
    $region36: #{wrapper_forward.1} parent=5 // pred_fallthru
      _
    %p949 = scmp.le.s32.totalorder 2, %s10
    // Predicated region
    $region41: #{wrapper_forward.1} parent=5 // pred_check
      %p950 = pneg %p949
    $region42: #{wrapper_forward.1} parent=5 // pred_check_branch
      %952 = sbr.rel (%p950) target = $region44
    $region43: #{wrapper_forward.1} parent=5 // pred_region
      %s953 = ssub.s32 %s10, 2
      // Predicated region
      $region45: #{wrapper_forward.1} parent=43 // pred_check
        %p954 = pneg %p144
      $region46: #{wrapper_forward.1} parent=43 // pred_check_branch
        %956 = sbr.rel (%p954) target = $region48
      $region47: #{wrapper_forward.1} parent=43 // pred_region
        %p957 = scmp.lt.s32.totalorder %s21, 1
        %s958 = scalar_select %p957, %s21, 1
        %p959 = scmp.lt.s32.totalorder %s22, 0
        %s960 = scalar_select %p959, %s22, 0
        %s961 = sadd.s32 %s960, %s958
        %s962 = smul.addr %s961, 8
        %s963 = scalar_lea.vmem %s4, %s962
      $region48: #{wrapper_forward.1} parent=43 // pred_fallthru
        _
    $region44: #{wrapper_forward.1} parent=5 // pred_fallthru
      _
  $region6: #{wrapper_forward.1} parent=0 // loop_footer
    %s14 = sadd.s32 1, %s10
  $region7: #{wrapper_forward.1} parent=0 // loop_footer_branch
    %9 = sbr.rel target = $region3
  $region8: #{wrapper_forward.1} parent=0 // loop_exit
    _

</llo_original>
